<compile_context>
chip_gen: v7x
topology: tpu7x:2x2x1
jax: 0.10.0
libtpu: 0.0.40
codegen_flags: <defaults>
</compile_context>

<pallas_src>
import functools

import jax
import jax.numpy as jnp
from jax.experimental import pallas as pl
from jax.experimental.pallas import tpu as pltpu


def _round_up(x, m):
    return ((x + m - 1) // m) * m


def _mlp_kernel(x_ref,
                w1_ref, b1_ref,
                w2_ref, b2_ref,
                w3_ref, b3_ref,
                w4_ref, b4_ref,
                o_ref):
    cd = w1_ref.dtype  # compute dtype for MXU inputs (bf16 by default)

    x = x_ref[...]

    # Layer 1: [block_b, E] @ [E, H] -> fp32 accum, fp32 bias/ReLU
    h = jnp.dot(x, w1_ref[...], preferred_element_type=jnp.float32) + b1_ref[...]
    h = jnp.maximum(h, 0.0)

    # Layer 2
    h = jnp.dot(h.astype(cd), w2_ref[...],
                preferred_element_type=jnp.float32) + b2_ref[...]
    h = jnp.maximum(h, 0.0)

    # Layer 3
    h = jnp.dot(h.astype(cd), w3_ref[...],
                preferred_element_type=jnp.float32) + b3_ref[...]
    h = jnp.maximum(h, 0.0)

    # Layer 4 (head)
    logits = jnp.dot(h.astype(cd), w4_ref[...],
                     preferred_element_type=jnp.float32) + b4_ref[...]

    # torch.sigmoid: exp on the EUP, approx reciprocal also on the EUP
    # (keeps the divide off the VALU).
    o_ref[...] = pl.reciprocal(1.0 + jnp.exp(-logits),
                               approx=True).astype(o_ref.dtype)


def _pick_block_b(b_rows):
    """Batch tile: multiple of 8, <= 2048 rows, >= 2 grid steps when possible
    (so a 'parallel' grid axis spans both v7x TensorCores)."""
    if b_rows <= 8:
        return 8
    half = _round_up(pl.cdiv(b_rows, 2), 8)
    return min(2048, max(8, half))


@functools.partial(jax.jit, static_argnames=("block_b", "compute_dtype"))
def classifier_forward(embs, params, *, block_b=None,
                       compute_dtype=jnp.bfloat16):
    """embs: [B, E] float32. params: dict of weights ([in, out]) and biases
    ([1, out]). Returns sigmoid(mlp(embs)) as [B, 2] float32."""
    B, E = embs.shape
    H = params["w1"].shape[1]
    OUT = params["w4"].shape[1]

    if block_b is None:
        block_b = _pick_block_b(B)
    block_b = max(8, _round_up(block_b, 8))

    # Pad the batch to a multiple of the tile (instead of asserting).
    Bp = _round_up(B, block_b)
    x = embs.astype(compute_dtype)
    if Bp != B:
        x = jnp.pad(x, ((0, Bp - B), (0, 0)))

    grid = (Bp // block_b,)

    # Cast weights to the MXU compute dtype; keep biases fp32 (added post-accum).
    w1 = params["w1"].astype(compute_dtype)
    w2 = params["w2"].astype(compute_dtype)
    w3 = params["w3"].astype(compute_dtype)
    w4 = params["w4"].astype(compute_dtype)
    b1 = params["b1"].astype(jnp.float32)
    b2 = params["b2"].astype(jnp.float32)
    b3 = params["b3"].astype(jnp.float32)
    b4 = params["b4"].astype(jnp.float32)

    full = lambda i: (0, 0)       # weights/biases: same full block every step
    batched = lambda i: (i, 0)    # inputs/outputs: tile over batch

    out = pl.pallas_call(
        _mlp_kernel,
        out_shape=jax.ShapeDtypeStruct((Bp, OUT), jnp.float32),
        grid_spec=pltpu.PrefetchScalarGridSpec(
            num_scalar_prefetch=0,
            grid=grid,
            in_specs=[
                pl.BlockSpec((block_b, E), batched),     # x (bf16)
                pl.BlockSpec((E, H), full),              # w1
                pl.BlockSpec((1, H), full),              # b1
                pl.BlockSpec((H, H), full),              # w2
                pl.BlockSpec((1, H), full),              # b2
                pl.BlockSpec((H, H), full),              # w3
                pl.BlockSpec((1, H), full),              # b3
                pl.BlockSpec((H, OUT), full),            # w4
                pl.BlockSpec((1, OUT), full),            # b4
            ],
            out_specs=pl.BlockSpec((block_b, OUT), batched),
        ),
        compiler_params=pltpu.CompilerParams(
            dimension_semantics=("parallel",),
            vmem_limit_bytes=32 * 1024 * 1024,
        ),
    )(x, w1, b1, w2, b2, w3, b3, w4, b4)

    return out[:B]

    # TODO(synk): the `labels is not None` branch (torch.nn.NLLLoss applied to
    # sigmoid outputs) is not implemented; it is a training-time loss head, not
    # part of the inference hot path.


def init_params(key, emb_dim, hidden_size):
    """Deterministic synthetic parameters with the same shapes as the nn.Module."""
    ks = jax.random.split(key, 8)

    def lin(kw, kb, fan_in, fan_out):
        bound = 1.0 / jnp.sqrt(fan_in)
        w = jax.random.uniform(kw, (fan_in, fan_out), jnp.float32, -bound, bound)
        b = jax.random.uniform(kb, (1, fan_out), jnp.float32, -bound, bound)
        return w, b

    w1, b1 = lin(ks[0], ks[1], emb_dim, hidden_size)
    w2, b2 = lin(ks[2], ks[3], hidden_size, hidden_size)
    w3, b3 = lin(ks[4], ks[5], hidden_size, hidden_size)
    w4, b4 = lin(ks[6], ks[7], hidden_size, 2)
    return {"w1": w1, "b1": b1, "w2": w2, "b2": b2,
            "w3": w3, "b3": b3, "w4": w4, "b4": b4}


def _reference(embs, p):
    h = jnp.maximum(embs @ p["w1"] + p["b1"], 0.0)
    h = jnp.maximum(h @ p["w2"] + p["b2"], 0.0)
    h = jnp.maximum(h @ p["w3"] + p["b3"], 0.0)
    return jax.nn.sigmoid(h @ p["w4"] + p["b4"])


if __name__ == "__main__":
    EMB_DIM, HIDDEN = 32, 32

    key = jax.random.PRNGKey(0)
    k_x, k_p, k_x2 = jax.random.split(key, 3)
    params = init_params(k_p, EMB_DIM, HIDDEN)

    # Case 1: batch not divisible by 8 -> exercises padding + multi-step grid.
    B1 = 250
    embs1 = jax.random.normal(k_x, (B1, EMB_DIM), dtype=jnp.float32)
    out1 = jax.block_until_ready(classifier_forward(embs1, params))
    ref1 = _reference(embs1, params)
    assert out1.shape == (B1, 2), out1.shape
    assert jnp.max(jnp.abs(out1 - ref1)) < 2e-2, "mismatch vs reference (case 1)"

    # Case 2: tiny batch, single grid step.
    B2 = 8
    embs2 = jax.random.normal(k_x2, (B2, EMB_DIM), dtype=jnp.float32)
    out2 = jax.block_until_ready(classifier_forward(embs2, params))
    ref2 = _reference(embs2, params)
    assert out2.shape == (B2, 2), out2.shape
    assert jnp.max(jnp.abs(out2 - ref2)) < 2e-2, "mismatch vs reference (case 2)"

    print("KERNEL_OK")
</pallas_src>

<mosaic_0001>
module attributes {stable_mosaic.version = 11 : i64} {
  func.func @_mlp_kernel(%arg0: i32, %arg1: memref<128x32xbf16, #tpu.memory_space<vmem>>, %arg2: memref<32x32xbf16, #tpu.memory_space<vmem>>, %arg3: memref<1x32xf32, #tpu.memory_space<vmem>>, %arg4: memref<32x32xbf16, #tpu.memory_space<vmem>>, %arg5: memref<1x32xf32, #tpu.memory_space<vmem>>, %arg6: memref<32x32xbf16, #tpu.memory_space<vmem>>, %arg7: memref<1x32xf32, #tpu.memory_space<vmem>>, %arg8: memref<32x2xbf16, #tpu.memory_space<vmem>>, %arg9: memref<1x2xf32, #tpu.memory_space<vmem>>, %arg10: memref<128x2xf32, #tpu.memory_space<vmem>>) attributes {dimension_semantics = [#tpu.dimension_semantics<parallel>], iteration_bounds = array<i64: 2>, scalar_prefetch = 0 : i64, scratch_operands = 0 : i64, tpu.core_type = #tpu.core_type<tc>, window_params = [{transform_indices = @transform_0, window_bounds = array<i64: 128, 32>}, {pipeline_mode = #tpu.pipeline_mode<synchronous>, transform_indices = @transform_1, window_bounds = array<i64: 32, 32>}, {pipeline_mode = #tpu.pipeline_mode<synchronous>, transform_indices = @transform_2, window_bounds = array<i64: 1, 32>}, {pipeline_mode = #tpu.pipeline_mode<synchronous>, transform_indices = @transform_3, window_bounds = array<i64: 32, 32>}, {pipeline_mode = #tpu.pipeline_mode<synchronous>, transform_indices = @transform_4, window_bounds = array<i64: 1, 32>}, {pipeline_mode = #tpu.pipeline_mode<synchronous>, transform_indices = @transform_5, window_bounds = array<i64: 32, 32>}, {pipeline_mode = #tpu.pipeline_mode<synchronous>, transform_indices = @transform_6, window_bounds = array<i64: 1, 32>}, {pipeline_mode = #tpu.pipeline_mode<synchronous>, transform_indices = @transform_7, window_bounds = array<i64: 32, 2>}, {pipeline_mode = #tpu.pipeline_mode<synchronous>, transform_indices = @transform_8, window_bounds = array<i64: 1, 2>}, {transform_indices = @transform_9, window_bounds = array<i64: 128, 2>}]} {
    %c0 = arith.constant 0 : index
    %c0_0 = arith.constant 0 : index
    %0 = vector.load %arg1[%c0, %c0_0] : memref<128x32xbf16, #tpu.memory_space<vmem>>, vector<128x32xbf16>
    %c0_1 = arith.constant 0 : index
    %c0_2 = arith.constant 0 : index
    %1 = vector.load %arg2[%c0_1, %c0_2] : memref<32x32xbf16, #tpu.memory_space<vmem>>, vector<32x32xbf16>
    %cst = arith.constant dense<0.000000e+00> : vector<128x32xf32>
    %2 = tpu.matmul %0, %1, %cst {dimension_numbers = #tpu.dot_dimension_numbers<[1], [0], [0], [1], [0, 0, 1, 1], [], []>} : vector<128x32xbf16>, vector<32x32xbf16>, vector<128x32xf32> -> vector<128x32xf32>
    %c0_3 = arith.constant 0 : index
    %c0_4 = arith.constant 0 : index
    %3 = vector.load %arg3[%c0_3, %c0_4] : memref<1x32xf32, #tpu.memory_space<vmem>>, vector<1x32xf32>
    %4 = vector.broadcast %3 : vector<1x32xf32> to vector<128x32xf32>
    %5 = arith.addf %2, %4 : vector<128x32xf32>
    %cst_5 = arith.constant 0.000000e+00 : f32
    %6 = vector.broadcast %cst_5 : f32 to vector<128x32xf32>
    %7 = arith.maximumf %5, %6 : vector<128x32xf32>
    %8 = arith.truncf %7 : vector<128x32xf32> to vector<128x32xbf16>
    %c0_6 = arith.constant 0 : index
    %c0_7 = arith.constant 0 : index
    %9 = vector.load %arg4[%c0_6, %c0_7] : memref<32x32xbf16, #tpu.memory_space<vmem>>, vector<32x32xbf16>
    %cst_8 = arith.constant dense<0.000000e+00> : vector<128x32xf32>
    %10 = tpu.matmul %8, %9, %cst_8 {dimension_numbers = #tpu.dot_dimension_numbers<[1], [0], [0], [1], [0, 0, 1, 1], [], []>} : vector<128x32xbf16>, vector<32x32xbf16>, vector<128x32xf32> -> vector<128x32xf32>
    %c0_9 = arith.constant 0 : index
    %c0_10 = arith.constant 0 : index
    %11 = vector.load %arg5[%c0_9, %c0_10] : memref<1x32xf32, #tpu.memory_space<vmem>>, vector<1x32xf32>
    %12 = vector.broadcast %11 : vector<1x32xf32> to vector<128x32xf32>
    %13 = arith.addf %10, %12 : vector<128x32xf32>
    %cst_11 = arith.constant 0.000000e+00 : f32
    %14 = vector.broadcast %cst_11 : f32 to vector<128x32xf32>
    %15 = arith.maximumf %13, %14 : vector<128x32xf32>
    %16 = arith.truncf %15 : vector<128x32xf32> to vector<128x32xbf16>
    %c0_12 = arith.constant 0 : index
    %c0_13 = arith.constant 0 : index
    %17 = vector.load %arg6[%c0_12, %c0_13] : memref<32x32xbf16, #tpu.memory_space<vmem>>, vector<32x32xbf16>
    %cst_14 = arith.constant dense<0.000000e+00> : vector<128x32xf32>
    %18 = tpu.matmul %16, %17, %cst_14 {dimension_numbers = #tpu.dot_dimension_numbers<[1], [0], [0], [1], [0, 0, 1, 1], [], []>} : vector<128x32xbf16>, vector<32x32xbf16>, vector<128x32xf32> -> vector<128x32xf32>
    %c0_15 = arith.constant 0 : index
    %c0_16 = arith.constant 0 : index
    %19 = vector.load %arg7[%c0_15, %c0_16] : memref<1x32xf32, #tpu.memory_space<vmem>>, vector<1x32xf32>
    %20 = vector.broadcast %19 : vector<1x32xf32> to vector<128x32xf32>
    %21 = arith.addf %18, %20 : vector<128x32xf32>
    %cst_17 = arith.constant 0.000000e+00 : f32
    %22 = vector.broadcast %cst_17 : f32 to vector<128x32xf32>
    %23 = arith.maximumf %21, %22 : vector<128x32xf32>
    %24 = arith.truncf %23 : vector<128x32xf32> to vector<128x32xbf16>
    %c0_18 = arith.constant 0 : index
    %c0_19 = arith.constant 0 : index
    %25 = vector.load %arg8[%c0_18, %c0_19] : memref<32x2xbf16, #tpu.memory_space<vmem>>, vector<32x2xbf16>
    %cst_20 = arith.constant dense<0.000000e+00> : vector<128x2xf32>
    %26 = tpu.matmul %24, %25, %cst_20 {dimension_numbers = #tpu.dot_dimension_numbers<[1], [0], [0], [1], [0, 0, 1, 1], [], []>} : vector<128x32xbf16>, vector<32x2xbf16>, vector<128x2xf32> -> vector<128x2xf32>
    %c0_21 = arith.constant 0 : index
    %c0_22 = arith.constant 0 : index
    %27 = vector.load %arg9[%c0_21, %c0_22] : memref<1x2xf32, #tpu.memory_space<vmem>>, vector<1x2xf32>
    %28 = vector.broadcast %27 : vector<1x2xf32> to vector<128x2xf32>
    %29 = arith.addf %26, %28 : vector<128x2xf32>
    %cst_23 = arith.constant 0.000000e+00 : f32
    %30 = vector.broadcast %cst_23 : f32 to vector<128x2xf32>
    %31 = arith.subf %30, %29 : vector<128x2xf32>
    %32 = math.exp %31 : vector<128x2xf32>
    %cst_24 = arith.constant 1.000000e+00 : f32
    %33 = vector.broadcast %cst_24 : f32 to vector<128x2xf32>
    %34 = arith.addf %33, %32 : vector<128x2xf32>
    %35 = tpu.reciprocal %34 {approx = true} : vector<128x2xf32> -> vector<128x2xf32>
    %c0_25 = arith.constant 0 : index
    %c0_26 = arith.constant 0 : index
    %36 = vector.load %arg10[%c0_25, %c0_26] : memref<128x2xf32, #tpu.memory_space<vmem>>, vector<128x2xf32>
    tpu.vector_store %arg10[%c0_25, %c0_26], %35 {strides = array<i32>} : memref<128x2xf32, #tpu.memory_space<vmem>>, vector<128x2xf32>,
    return
  }
  func.func @transform_0(%arg0: i32) -> (i32, i32) {
    %c0_i32 = arith.constant 0 : i32
    %c0_i32_0 = arith.constant 0 : i32
    return %arg0, %c0_i32 : i32, i32
  }
  func.func @transform_1(%arg0: i32) -> (i32, i32) {
    %c0_i32 = arith.constant 0 : i32
    %c0_i32_0 = arith.constant 0 : i32
    %c0_i32_1 = arith.constant 0 : i32
    return %c0_i32, %c0_i32_0 : i32, i32
  }
  func.func @transform_2(%arg0: i32) -> (i32, i32) {
    %c0_i32 = arith.constant 0 : i32
    %c0_i32_0 = arith.constant 0 : i32
    %c0_i32_1 = arith.constant 0 : i32
    return %c0_i32, %c0_i32_0 : i32, i32
  }
  func.func @transform_3(%arg0: i32) -> (i32, i32) {
    %c0_i32 = arith.constant 0 : i32
    %c0_i32_0 = arith.constant 0 : i32
    %c0_i32_1 = arith.constant 0 : i32
    return %c0_i32, %c0_i32_0 : i32, i32
  }
  func.func @transform_4(%arg0: i32) -> (i32, i32) {
    %c0_i32 = arith.constant 0 : i32
    %c0_i32_0 = arith.constant 0 : i32
    %c0_i32_1 = arith.constant 0 : i32
    return %c0_i32, %c0_i32_0 : i32, i32
  }
  func.func @transform_5(%arg0: i32) -> (i32, i32) {
    %c0_i32 = arith.constant 0 : i32
    %c0_i32_0 = arith.constant 0 : i32
    %c0_i32_1 = arith.constant 0 : i32
    return %c0_i32, %c0_i32_0 : i32, i32
  }
  func.func @transform_6(%arg0: i32) -> (i32, i32) {
    %c0_i32 = arith.constant 0 : i32
    %c0_i32_0 = arith.constant 0 : i32
    %c0_i32_1 = arith.constant 0 : i32
    return %c0_i32, %c0_i32_0 : i32, i32
  }
  func.func @transform_7(%arg0: i32) -> (i32, i32) {
    %c0_i32 = arith.constant 0 : i32
    %c0_i32_0 = arith.constant 0 : i32
    %c0_i32_1 = arith.constant 0 : i32
    return %c0_i32, %c0_i32_0 : i32, i32
  }
  func.func @transform_8(%arg0: i32) -> (i32, i32) {
    %c0_i32 = arith.constant 0 : i32
    %c0_i32_0 = arith.constant 0 : i32
    %c0_i32_1 = arith.constant 0 : i32
    return %c0_i32, %c0_i32_0 : i32, i32
  }
  func.func @transform_9(%arg0: i32) -> (i32, i32) {
    %c0_i32 = arith.constant 0 : i32
    %c0_i32_0 = arith.constant 0 : i32
    return %arg0, %c0_i32 : i32, i32
  }
}

</mosaic_0001>

<llo_original>
// kernel: classifier_forward.1
$region0: #{classifier_forward.1}
  #allocation0 [shape = 'u32[]', space=smem, size = 0x4, offset = 0x4, fixed_abs, tag = 'smem constant byte address 0x4 - core index']
  #allocation1 [shape = 'u32[144,128]{1,0:T(1,128)}', space=vmem, size = 0x12000, scoped, tag = 'internal scratch']
  %s0 = inlined_call_operand.vmem [shape: bf16[256,32], index: 0, kind: input, shape index: {}]
  %s1 = inlined_call_operand.vmem [shape: bf16[32,32], index: 1, kind: input, shape index: {}]
  %s2 = inlined_call_operand.vmem [shape: f32[1,32], index: 2, kind: input, shape index: {}]
  %s3 = inlined_call_operand.vmem [shape: bf16[32,32], index: 3, kind: input, shape index: {}]
  %s4 = inlined_call_operand.vmem [shape: f32[1,32], index: 4, kind: input, shape index: {}]
  %s5 = inlined_call_operand.vmem [shape: bf16[32,32], index: 5, kind: input, shape index: {}]
  %s6 = inlined_call_operand.vmem [shape: f32[1,32], index: 6, kind: input, shape index: {}]
  %s7 = inlined_call_operand.vmem [shape: bf16[32,2], index: 7, kind: input, shape index: {}]
  %s8 = inlined_call_operand.vmem [shape: f32[1,2], index: 8, kind: input, shape index: {}]
  %s9 = inlined_call_operand.vmem [shape: f32[256,2], index: 9, kind: output, shape index: {}]
  %s10 = sld [smem:[#allocation0]]
  $region69: #{classifier_forward.1} parent=0
    _
  %s12 = ssub.s32 1, %s10
  %s13 = scalar_select 0, %s12, %s10
  loop: start=0, step=1, limit=4
  $region2: #{classifier_forward.1} parent=0 // loop_pre_header
    _
  $region3: #{classifier_forward.1} parent=0 // loop_header
    %s15 = sphi 0, %s19
    %p16 = scmp.ge.s32.totalorder %s15, 4
    %s25 = sphi 0, %s27
    %s28 = sphi 0, %s25
    %s29 = sphi 0, %s28
    %s45 = sphi 0, %s29
    %s49 = sphi 0, %s49
    %s51 = sphi 0, %s49
    %s52 = sphi 0, %s51
    %s66 = sphi 0, %s52
    %s70 = sphi 0, %s70
    %s72 = sphi 0, %s70
    %s73 = sphi 0, %s72
    %s87 = sphi 0, %s73
    %s91 = sphi 0, %s91
    %s93 = sphi 0, %s91
    %s94 = sphi 0, %s93
    %s108 = sphi 0, %s94
    %s112 = sphi 0, %s112
    %s114 = sphi 0, %s112
    %s115 = sphi 0, %s114
    %s129 = sphi 0, %s115
    %s133 = sphi 0, %s133
    %s135 = sphi 0, %s133
    %s136 = sphi 0, %s135
    %s150 = sphi 0, %s136
    %s154 = sphi 0, %s154
    %s156 = sphi 0, %s154
    %s157 = sphi 0, %s156
    %s171 = sphi 0, %s157
    %s175 = sphi 0, %s175
    %s177 = sphi 0, %s175
    %s178 = sphi 0, %s177
    %s192 = sphi 0, %s178
    %s196 = sphi 0, %s196
    %s198 = sphi 0, %s196
    %s199 = sphi 0, %s198
    %s213 = sphi 0, %s199
    %s219 = sphi 0, %s221
    %s222 = sphi 0, %s219
    %s223 = sphi 0, %s222
    %s239 = sphi 0, %s223
  $region4: #{classifier_forward.1} parent=0 // loop_header_branch
    %18 = sbr.rel (%p16) target = $region8
  $region5: #{classifier_forward.1} parent=0 // loop_body
    %s20 = ssub.s32 %s15, 1
    %s21 = ssub.s32 %s15, 2
    %s22 = sadd.s32 %s15, 1
    %s23 = ssub.s32 %s15, %s22
    %p24 = scmp.eq.s32.totalorder %s23, 0
    %s26 = sadd.s32 %s25, 1
    %s27 = scalar_select %p24, %s25, %s26
    %p30 = pneg %p24
    %p31 = scmp.eq.s32.totalorder %s15, 1
    %p32 = por %p30, %p31
    %p33 = scmp.ne.s32.totalorder %s25, %s28
    %p34 = scmp.eq.s32.totalorder %s15, 0
    %p35 = por %p33, %p34
    %p36 = scmp.ne.s32.totalorder %s25, %s28
    %p37 = scmp.eq.s32.totalorder %s20, 1
    %p38 = por %p36, %p37
    %p39 = scmp.ne.s32.totalorder %s28, %s29
    %p40 = scmp.eq.s32.totalorder %s20, 0
    %p41 = por %p39, %p40
    %p42 = scmp.ne.s32.totalorder %s28, %s29
    %p43 = scmp.eq.s32.totalorder %s21, 1
    %p44 = por %p42, %p43
    %p46 = scmp.ne.s32.totalorder %s29, %s45
    %p47 = scmp.eq.s32.totalorder %s21, 0
    %p48 = por %p46, %p47
    %s50 = sadd.s32 %s49, 1
    %p53 = scmp.eq.s32.totalorder %s15, 1
    %p54 = scmp.ne.s32.totalorder %s49, %s51
    %p55 = scmp.eq.s32.totalorder %s15, 0
    %p56 = por %p54, %p55
    %p57 = scmp.ne.s32.totalorder %s49, %s51
    %p58 = scmp.eq.s32.totalorder %s20, 1
    %p59 = por %p57, %p58
    %p60 = scmp.ne.s32.totalorder %s51, %s52
    %p61 = scmp.eq.s32.totalorder %s20, 0
    %p62 = por %p60, %p61
    %p63 = scmp.ne.s32.totalorder %s51, %s52
    %p64 = scmp.eq.s32.totalorder %s21, 1
    %p65 = por %p63, %p64
    %p67 = scmp.ne.s32.totalorder %s52, %s66
    %p68 = scmp.eq.s32.totalorder %s21, 0
    %p69 = por %p67, %p68
    %s71 = sadd.s32 %s70, 1
    %p74 = scmp.eq.s32.totalorder %s15, 1
    %p75 = scmp.ne.s32.totalorder %s70, %s72
    %p76 = scmp.eq.s32.totalorder %s15, 0
    %p77 = por %p75, %p76
    %p78 = scmp.ne.s32.totalorder %s70, %s72
    %p79 = scmp.eq.s32.totalorder %s20, 1
    %p80 = por %p78, %p79
    %p81 = scmp.ne.s32.totalorder %s72, %s73
    %p82 = scmp.eq.s32.totalorder %s20, 0
    %p83 = por %p81, %p82
    %p84 = scmp.ne.s32.totalorder %s72, %s73
    %p85 = scmp.eq.s32.totalorder %s21, 1
    %p86 = por %p84, %p85
    %p88 = scmp.ne.s32.totalorder %s73, %s87
    %p89 = scmp.eq.s32.totalorder %s21, 0
    %p90 = por %p88, %p89
    %s92 = sadd.s32 %s91, 1
    %p95 = scmp.eq.s32.totalorder %s15, 1
    %p96 = scmp.ne.s32.totalorder %s91, %s93
    %p97 = scmp.eq.s32.totalorder %s15, 0
    %p98 = por %p96, %p97
    %p99 = scmp.ne.s32.totalorder %s91, %s93
    %p100 = scmp.eq.s32.totalorder %s20, 1
    %p101 = por %p99, %p100
    %p102 = scmp.ne.s32.totalorder %s93, %s94
    %p103 = scmp.eq.s32.totalorder %s20, 0
    %p104 = por %p102, %p103
    %p105 = scmp.ne.s32.totalorder %s93, %s94
    %p106 = scmp.eq.s32.totalorder %s21, 1
    %p107 = por %p105, %p106
    %p109 = scmp.ne.s32.totalorder %s94, %s108
    %p110 = scmp.eq.s32.totalorder %s21, 0
    %p111 = por %p109, %p110
    %s113 = sadd.s32 %s112, 1
    %p116 = scmp.eq.s32.totalorder %s15, 1
    %p117 = scmp.ne.s32.totalorder %s112, %s114
    %p118 = scmp.eq.s32.totalorder %s15, 0
    %p119 = por %p117, %p118
    %p120 = scmp.ne.s32.totalorder %s112, %s114
    %p121 = scmp.eq.s32.totalorder %s20, 1
    %p122 = por %p120, %p121
    %p123 = scmp.ne.s32.totalorder %s114, %s115
    %p124 = scmp.eq.s32.totalorder %s20, 0
    %p125 = por %p123, %p124
    %p126 = scmp.ne.s32.totalorder %s114, %s115
    %p127 = scmp.eq.s32.totalorder %s21, 1
    %p128 = por %p126, %p127
    %p130 = scmp.ne.s32.totalorder %s115, %s129
    %p131 = scmp.eq.s32.totalorder %s21, 0
    %p132 = por %p130, %p131
    %s134 = sadd.s32 %s133, 1
    %p137 = scmp.eq.s32.totalorder %s15, 1
    %p138 = scmp.ne.s32.totalorder %s133, %s135
    %p139 = scmp.eq.s32.totalorder %s15, 0
    %p140 = por %p138, %p139
    %p141 = scmp.ne.s32.totalorder %s133, %s135
    %p142 = scmp.eq.s32.totalorder %s20, 1
    %p143 = por %p141, %p142
    %p144 = scmp.ne.s32.totalorder %s135, %s136
    %p145 = scmp.eq.s32.totalorder %s20, 0
    %p146 = por %p144, %p145
    %p147 = scmp.ne.s32.totalorder %s135, %s136
    %p148 = scmp.eq.s32.totalorder %s21, 1
    %p149 = por %p147, %p148
    %p151 = scmp.ne.s32.totalorder %s136, %s150
    %p152 = scmp.eq.s32.totalorder %s21, 0
    %p153 = por %p151, %p152
    %s155 = sadd.s32 %s154, 1
    %p158 = scmp.eq.s32.totalorder %s15, 1
    %p159 = scmp.ne.s32.totalorder %s154, %s156
    %p160 = scmp.eq.s32.totalorder %s15, 0
    %p161 = por %p159, %p160
    %p162 = scmp.ne.s32.totalorder %s154, %s156
    %p163 = scmp.eq.s32.totalorder %s20, 1
    %p164 = por %p162, %p163
    %p165 = scmp.ne.s32.totalorder %s156, %s157
    %p166 = scmp.eq.s32.totalorder %s20, 0
    %p167 = por %p165, %p166
    %p168 = scmp.ne.s32.totalorder %s156, %s157
    %p169 = scmp.eq.s32.totalorder %s21, 1
    %p170 = por %p168, %p169
    %p172 = scmp.ne.s32.totalorder %s157, %s171
    %p173 = scmp.eq.s32.totalorder %s21, 0
    %p174 = por %p172, %p173
    %s176 = sadd.s32 %s175, 1
    %p179 = scmp.eq.s32.totalorder %s15, 1
    %p180 = scmp.ne.s32.totalorder %s175, %s177
    %p181 = scmp.eq.s32.totalorder %s15, 0
    %p182 = por %p180, %p181
    %p183 = scmp.ne.s32.totalorder %s175, %s177
    %p184 = scmp.eq.s32.totalorder %s20, 1
    %p185 = por %p183, %p184
    %p186 = scmp.ne.s32.totalorder %s177, %s178
    %p187 = scmp.eq.s32.totalorder %s20, 0
    %p188 = por %p186, %p187
    %p189 = scmp.ne.s32.totalorder %s177, %s178
    %p190 = scmp.eq.s32.totalorder %s21, 1
    %p191 = por %p189, %p190
    %p193 = scmp.ne.s32.totalorder %s178, %s192
    %p194 = scmp.eq.s32.totalorder %s21, 0
    %p195 = por %p193, %p194
    %s197 = sadd.s32 %s196, 1
    %p200 = scmp.eq.s32.totalorder %s15, 1
    %p201 = scmp.ne.s32.totalorder %s196, %s198
    %p202 = scmp.eq.s32.totalorder %s15, 0
    %p203 = por %p201, %p202
    %p204 = scmp.ne.s32.totalorder %s196, %s198
    %p205 = scmp.eq.s32.totalorder %s20, 1
    %p206 = por %p204, %p205
    %p207 = scmp.ne.s32.totalorder %s198, %s199
    %p208 = scmp.eq.s32.totalorder %s20, 0
    %p209 = por %p207, %p208
    %p210 = scmp.ne.s32.totalorder %s198, %s199
    %p211 = scmp.eq.s32.totalorder %s21, 1
    %p212 = por %p210, %p211
    %p214 = scmp.ne.s32.totalorder %s199, %s213
    %p215 = scmp.eq.s32.totalorder %s21, 0
    %p216 = por %p214, %p215
    %s217 = ssub.s32 %s15, %s22
    %p218 = scmp.eq.s32.totalorder %s217, 0
    %s220 = sadd.s32 %s219, 1
    %s221 = scalar_select %p218, %s219, %s220
    %p224 = pneg %p218
    %p225 = scmp.eq.s32.totalorder %s15, 1
    %p226 = por %p224, %p225
    %p227 = scmp.ne.s32.totalorder %s219, %s222
    %p228 = scmp.eq.s32.totalorder %s15, 0
    %p229 = por %p227, %p228
    %p230 = scmp.ne.s32.totalorder %s219, %s222
    %p231 = scmp.eq.s32.totalorder %s20, 1
    %p232 = por %p230, %p231
    %p233 = scmp.ne.s32.totalorder %s222, %s223
    %p234 = scmp.eq.s32.totalorder %s20, 0
    %p235 = por %p233, %p234
    %p236 = scmp.ne.s32.totalorder %s222, %s223
    %p237 = scmp.eq.s32.totalorder %s21, 1
    %p238 = por %p236, %p237
    %p240 = scmp.ne.s32.totalorder %s223, %s239
    %p241 = scmp.eq.s32.totalorder %s21, 0
    %p242 = por %p240, %p241
    %p243 = scmp.le.s32.totalorder 1, %s15
    %p244 = scmp.lt.s32.totalorder %s15, 3
    %p245 = pnand %p243, %p244
    %p246 = pneg %p245
    // Predicated region
    $region9: #{classifier_forward.1} parent=5 // pred_check
      _
    $region10: #{classifier_forward.1} parent=5 // pred_check_branch
      %248 = sbr.rel (%p245) target = $region12
    $region11: #{classifier_forward.1} parent=5 // pred_region
      %s249 = ssub.s32 %s15, 1
      // Predicated region
      $region13: #{classifier_forward.1} parent=11 // pred_check
        %p250 = pneg %p62
      $region14: #{classifier_forward.1} parent=11 // pred_check_branch
        %252 = sbr.rel (%p250) target = $region16
      $region15: #{classifier_forward.1} parent=11 // pred_region
        _
      $region16: #{classifier_forward.1} parent=11 // pred_fallthru
        _
      // Predicated region
      $region17: #{classifier_forward.1} parent=11 // pred_check
        %p253 = pneg %p83
      $region18: #{classifier_forward.1} parent=11 // pred_check_branch
        %255 = sbr.rel (%p253) target = $region20
      $region19: #{classifier_forward.1} parent=11 // pred_region
        _
      $region20: #{classifier_forward.1} parent=11 // pred_fallthru
        _
      // Predicated region
      $region21: #{classifier_forward.1} parent=11 // pred_check
        %p256 = pneg %p104
      $region22: #{classifier_forward.1} parent=11 // pred_check_branch
        %258 = sbr.rel (%p256) target = $region24
      $region23: #{classifier_forward.1} parent=11 // pred_region
        _
      $region24: #{classifier_forward.1} parent=11 // pred_fallthru
        _
      // Predicated region
      $region25: #{classifier_forward.1} parent=11 // pred_check
        %p259 = pneg %p125
      $region26: #{classifier_forward.1} parent=11 // pred_check_branch
        %261 = sbr.rel (%p259) target = $region28
      $region27: #{classifier_forward.1} parent=11 // pred_region
        _
      $region28: #{classifier_forward.1} parent=11 // pred_fallthru
        _
      // Predicated region
      $region29: #{classifier_forward.1} parent=11 // pred_check
        %p262 = pneg %p146
      $region30: #{classifier_forward.1} parent=11 // pred_check_branch
        %264 = sbr.rel (%p262) target = $region32
      $region31: #{classifier_forward.1} parent=11 // pred_region
        _
      $region32: #{classifier_forward.1} parent=11 // pred_fallthru
        _
      // Predicated region
      $region33: #{classifier_forward.1} parent=11 // pred_check
        %p265 = pneg %p167
      $region34: #{classifier_forward.1} parent=11 // pred_check_branch
        %267 = sbr.rel (%p265) target = $region36
      $region35: #{classifier_forward.1} parent=11 // pred_region
        _
      $region36: #{classifier_forward.1} parent=11 // pred_fallthru
        _
      // Predicated region
      $region37: #{classifier_forward.1} parent=11 // pred_check
        %p268 = pneg %p188
      $region38: #{classifier_forward.1} parent=11 // pred_check_branch
        %270 = sbr.rel (%p268) target = $region40
      $region39: #{classifier_forward.1} parent=11 // pred_region
        _
      $region40: #{classifier_forward.1} parent=11 // pred_fallthru
        _
      // Predicated region
      $region41: #{classifier_forward.1} parent=11 // pred_check
        %p271 = pneg %p209
      $region42: #{classifier_forward.1} parent=11 // pred_check_branch
        %273 = sbr.rel (%p271) target = $region44
      $region43: #{classifier_forward.1} parent=11 // pred_region
        _
      $region44: #{classifier_forward.1} parent=11 // pred_fallthru
        _
    $region12: #{classifier_forward.1} parent=5 // pred_fallthru
      _
    %p274 = scmp.lt.s32.totalorder %s15, 2
    // Predicated region
    $region45: #{classifier_forward.1} parent=5 // pred_check
      %p275 = pneg %p274
    $region46: #{classifier_forward.1} parent=5 // pred_check_branch
      %277 = sbr.rel (%p275) target = $region48
    $region47: #{classifier_forward.1} parent=5 // pred_region
      // Predicated region
      $region49: #{classifier_forward.1} parent=47 // pred_check
        %p278 = pneg %p35
      $region50: #{classifier_forward.1} parent=47 // pred_check_branch
        %280 = sbr.rel (%p278) target = $region52
      $region51: #{classifier_forward.1} parent=47 // pred_region
        %s281 = smul.u32 16, %s15
        %p282 = scmp.lt.s32.totalorder %s281, 31
        %s283 = scalar_select %p282, %s281, 31
        %s284 = smul.addr %s283, 4
        %s285 = scalar_lea.vmem %s0, %s284
        %s286 = smul.u32 16, %s15
      $region52: #{classifier_forward.1} parent=47 // pred_fallthru
        _
    $region48: #{classifier_forward.1} parent=5 // pred_fallthru
      _
    %p287 = scmp.le.s32.totalorder 1, %s15
    %p288 = scmp.lt.s32.totalorder %s15, 3
    %p289 = pnand %p287, %p288
    %p290 = pneg %p289
    // Predicated region
    $region53: #{classifier_forward.1} parent=5 // pred_check
      _
    $region54: #{classifier_forward.1} parent=5 // pred_check_branch
      %292 = sbr.rel (%p289) target = $region56
    $region55: #{classifier_forward.1} parent=5 // pred_region
      %s293 = ssub.s32 %s15, 1
      %s294 = smul.u32 16, %s20
      %p295 = scmp.lt.s32.totalorder %s294, 31
      %s296 = scalar_select %p295, %s294, 31
      %s297 = smul.addr %s296, 4
      %s298 = scalar_lea.vmem %s0, %s297
      %p299 = pneg %p41
      %p300 = pneg %p38
      %p301 = pneg %p62
      %p302 = pneg %p59
      %p303 = pneg %p83
      %p304 = pneg %p80
      %p305 = pneg %p104
      %p306 = pneg %p101
      %p307 = pneg %p125
      %p308 = pneg %p122
      %p309 = pneg %p146
      %p310 = pneg %p143
      %p311 = pneg %p167
      %p312 = pneg %p164
      %p313 = pneg %p188
      %p314 = pneg %p185
      %p315 = pneg %p209
      %p316 = pneg %p206
      %p317 = pneg %p235
      %p318 = pneg %p232
      %s319 = smul.u32 16, %s20
      %p320 = scmp.lt.s32.totalorder %s319, 31
      %s321 = scalar_select %p320, %s319, 31
      %s322 = smul.addr %s321, 8
      %s323 = scalar_lea.vmem %s9, %s322
      %s324 = smul.u32 16, %s20
      %p325 = scmp.lt.s32.totalorder %s324, 31
      %s326 = scalar_select %p325, %s324, 31
      %s327 = smul.addr %s326, 4
      %s328 = scalar_lea.vmem %s0, %s327
      %s329 = smul.u32 16, %s20
      %s330 = smul.u32 16, %s20
      %p331 = scmp.lt.s32.totalorder %s330, 31
      %s332 = scalar_select %p331, %s330, 31
      %s333 = smul.addr %s332, 8
      %s334 = scalar_lea.vmem %s9, %s333
      %s335 = smul.u32 16, %s20
      %v337 = vld [vmem:[%s328] sm:$0xf]
      %v338 = vld [vmem:[%s328 + $0x4] sm:$0xf]
      %v339 = vld [vmem:[%s328 + $0x8] sm:$0xf]
      %v340 = vld [vmem:[%s328 + $0xc] sm:$0xf]
      %v341 = vld [vmem:[%s328 + $0x10] sm:$0xf]
      %v342 = vld [vmem:[%s328 + $0x14] sm:$0xf]
      %v343 = vld [vmem:[%s328 + $0x18] sm:$0xf]
      %v344 = vld [vmem:[%s328 + $0x1c] sm:$0xf]
      %v345 = vld [vmem:[%s328 + $0x20] sm:$0xf]
      %v346 = vld [vmem:[%s328 + $0x24] sm:$0xf]
      %v347 = vld [vmem:[%s328 + $0x28] sm:$0xf]
      %v348 = vld [vmem:[%s328 + $0x2c] sm:$0xf]
      %v349 = vld [vmem:[%s328 + $0x30] sm:$0xf]
      %v350 = vld [vmem:[%s328 + $0x34] sm:$0xf]
      %v351 = vld [vmem:[%s328 + $0x38] sm:$0xf]
      %v352 = vld [vmem:[%s328 + $0x3c] sm:$0xf]
      %v353 = vld [vmem:[%s1] sm:$0xf]
      %v354 = vld [vmem:[%s1 + $0x4] sm:$0xf]
      %v355 = vld [vmem:[%s1 + $0x8] sm:$0xf]
      %v356 = vld [vmem:[%s1 + $0xc] sm:$0xf]
      %v357 = vld [vmem:[%s2] sm:$0x1]
      %v359 = vlaneseq
      %v360 = vshrl.u32 %v359, 7
      %v361 = vsub.s32 0, %v360
      %v362 = vrot.slane %v357, %v361
      %v380 = vunpack.c.l.b16 %v337
      %v381 = vunpack.c.l.b16 %v338
      %v382 = vunpack.c.l.b16 %v339
      %v383 = vunpack.c.l.b16 %v340
      %v384 = vunpack.c.l.b16 %v341
      %v385 = vunpack.c.l.b16 %v342
      %v386 = vunpack.c.l.b16 %v343
      %v387 = vunpack.c.l.b16 %v344
      %v388 = vunpack.c.l.b16 %v345
      %v389 = vunpack.c.l.b16 %v346
      %v390 = vunpack.c.l.b16 %v347
      %v391 = vunpack.c.l.b16 %v348
      %v392 = vunpack.c.l.b16 %v349
      %v393 = vunpack.c.l.b16 %v350
      %v394 = vunpack.c.l.b16 %v351
      %v395 = vunpack.c.l.b16 %v352
      %v396 = vpack.c.b16 %v381, %v380
      %v397 = vpack.c.b16 %v383, %v382
      %v398 = vpack.c.b16 %v385, %v384
      %v399 = vpack.c.b16 %v387, %v386
      %v400 = vpack.c.b16 %v389, %v388
      %v401 = vpack.c.b16 %v391, %v390
      %v402 = vpack.c.b16 %v393, %v392
      %v403 = vpack.c.b16 %v395, %v394
      %v408 = vunpack.c.l.b16 %v353
      %v409 = vunpack.c.l.b16 %v354
      %v410 = vunpack.c.l.b16 %v355
      %v411 = vunpack.c.l.b16 %v356
      %v412 = vpack.c.b16 %v409, %v408
      %v413 = vpack.c.b16 %v411, %v410
      %vm416 = vcmask 261120
      %v418 = vsel %vm416, %v396, 0
      %v421 = vsel %vm416, %v397, 0
      %v424 = vsel %vm416, %v398, 0
      %v427 = vsel %vm416, %v399, 0
      %v430 = vsel %vm416, %v400, 0
      %v433 = vsel %vm416, %v401, 0
      %v436 = vsel %vm416, %v402, 0
      %v439 = vsel %vm416, %v403, 0
      %441 = vmatprep.subr.bf16.mxu0 0
      %442 = vmatpush1.bf16.msra.mxu0 %v412
      %443 = vmatprep.subr.bf16.mxu0 0
      %444 = vmatpush1.bf16.msra.mxu0 %v413
      %445 = vmatprep.subr.bf16.mxu0 0
      %446 = vmatpush1.bf16.msra.mxu0 0
      %447 = vmatprep.subr.bf16.mxu0 0
      %448 = vmatpush1.bf16.msra.mxu0 0
      %449 = vmatprep.subr.bf16.mxu0 0
      %450 = vmatpush1.bf16.msra.mxu0 0
      %451 = vmatprep.subr.bf16.mxu0 0
      %452 = vmatpush1.bf16.msra.mxu0 0
      %453 = vmatprep.subr.bf16.mxu0 0
      %454 = vmatpush1.bf16.msra.mxu0 0
      %455 = vmatprep.subr.bf16.mxu0 0
      %456 = vmatpush1.bf16.msra.mxu0 0
      %457 = vmatprep.subr.bf16.mxu0 0
      %458 = vmatpush1.bf16.msra.mxu0 0
      %459 = vmatprep.subr.bf16.mxu0 0
      %460 = vmatpush1.bf16.msra.mxu0 0
      %461 = vmatprep.subr.bf16.mxu0 0
      %462 = vmatpush1.bf16.msra.mxu0 0
      %463 = vmatprep.subr.bf16.mxu0 0
      %464 = vmatpush1.bf16.msra.mxu0 0
      %465 = vmatprep.subr.bf16.mxu0 0
      %466 = vmatpush1.bf16.msra.mxu0 0
      %467 = vmatprep.subr.bf16.mxu0 0
      %468 = vmatpush1.bf16.msra.mxu0 0
      %469 = vmatprep.subr.bf16.mxu0 0
      %470 = vmatpush1.bf16.msra.mxu0 0
      %471 = vmatprep.subr.bf16.mxu0 0
      %472 = vmatpush1.bf16.msra.mxu0 0
      %473 = vmatprep.mubr.bf16.mxu0 0
      %474 = vmatmul.mubr.bf16.gmra.mrb[0].mxu0 %v418
      %v475 = vpop.f32.mrb[0].mxu0
      %v476 = vadd.f32 %v362, %v475
      %v477 = vpop.f32.mrb[0].mxu0
      %v478 = vpop.f32.mrb[0].mxu0
      %v479 = vadd.f32 %v362, %v478
      %v480 = vpop.f32.mrb[0].mxu0
      %481 = vmatprep.mubr.bf16.mxu0 0
      %482 = vmatmul.mubr.bf16.gmra.mrb[0].mxu0 %v421
      %v483 = vpop.f32.mrb[0].mxu0
      %v484 = vadd.f32 %v362, %v483
      %v485 = vpop.f32.mrb[0].mxu0
      %v486 = vpop.f32.mrb[0].mxu0
      %v487 = vadd.f32 %v362, %v486
      %v488 = vpop.f32.mrb[0].mxu0
      %489 = vmatprep.mubr.bf16.mxu0 0
      %490 = vmatmul.mubr.bf16.gmra.mrb[0].mxu0 %v424
      %v491 = vpop.f32.mrb[0].mxu0
      %v492 = vadd.f32 %v362, %v491
      %v493 = vpop.f32.mrb[0].mxu0
      %v494 = vpop.f32.mrb[0].mxu0
      %v495 = vadd.f32 %v362, %v494
      %v496 = vpop.f32.mrb[0].mxu0
      %497 = vmatprep.mubr.bf16.mxu0 0
      %498 = vmatmul.mubr.bf16.gmra.mrb[0].mxu0 %v427
      %v499 = vpop.f32.mrb[0].mxu0
      %v500 = vadd.f32 %v362, %v499
      %v501 = vpop.f32.mrb[0].mxu0
      %v502 = vpop.f32.mrb[0].mxu0
      %v503 = vadd.f32 %v362, %v502
      %v504 = vpop.f32.mrb[0].mxu0
      %505 = vmatprep.mubr.bf16.mxu0 0
      %506 = vmatmul.mubr.bf16.gmra.mrb[0].mxu0 %v430
      %v507 = vpop.f32.mrb[0].mxu0
      %v508 = vadd.f32 %v362, %v507
      %v509 = vpop.f32.mrb[0].mxu0
      %v510 = vpop.f32.mrb[0].mxu0
      %v511 = vadd.f32 %v362, %v510
      %v512 = vpop.f32.mrb[0].mxu0
      %513 = vmatprep.mubr.bf16.mxu0 0
      %514 = vmatmul.mubr.bf16.gmra.mrb[0].mxu0 %v433
      %v515 = vpop.f32.mrb[0].mxu0
      %v516 = vadd.f32 %v362, %v515
      %v517 = vpop.f32.mrb[0].mxu0
      %v518 = vpop.f32.mrb[0].mxu0
      %v519 = vadd.f32 %v362, %v518
      %v520 = vpop.f32.mrb[0].mxu0
      %521 = vmatprep.mubr.bf16.mxu0 0
      %522 = vmatmul.mubr.bf16.gmra.mrb[0].mxu0 %v436
      %v523 = vpop.f32.mrb[0].mxu0
      %v524 = vadd.f32 %v362, %v523
      %v525 = vpop.f32.mrb[0].mxu0
      %v526 = vpop.f32.mrb[0].mxu0
      %v527 = vadd.f32 %v362, %v526
      %v528 = vpop.f32.mrb[0].mxu0
      %529 = vmatprep.mubr.bf16.mxu0 0
      %530 = vmatmul.mubr.bf16.gmra.mrb[0].mxu0 %v439
      %v531 = vpop.f32.mrb[0].mxu0
      %v532 = vadd.f32 %v362, %v531
      %v533 = vpop.f32.mrb[0].mxu0
      %v534 = vpop.f32.mrb[0].mxu0
      %v535 = vadd.f32 %v362, %v534
      %v536 = vpop.f32.mrb[0].mxu0
      %537 = vdwg.mxu0
      %v538 = vmax.f32 %v476, 0.0
      %v539 = vmax.f32 %v479, 0.0
      %v540 = vmax.f32 %v484, 0.0
      %v541 = vmax.f32 %v487, 0.0
      %v542 = vmax.f32 %v492, 0.0
      %v543 = vmax.f32 %v495, 0.0
      %v544 = vmax.f32 %v500, 0.0
      %v545 = vmax.f32 %v503, 0.0
      %v546 = vmax.f32 %v508, 0.0
      %v547 = vmax.f32 %v511, 0.0
      %v548 = vmax.f32 %v516, 0.0
      %v549 = vmax.f32 %v519, 0.0
      %v550 = vmax.f32 %v524, 0.0
      %v551 = vmax.f32 %v527, 0.0
      %v552 = vmax.f32 %v532, 0.0
      %v553 = vmax.f32 %v535, 0.0
      %v554 = vpack.c.bf16 %v539, %v538
      %v555 = vpack.c.bf16 %v541, %v540
      %v556 = vpack.c.bf16 %v543, %v542
      %v557 = vpack.c.bf16 %v545, %v544
      %v558 = vpack.c.bf16 %v547, %v546
      %v559 = vpack.c.bf16 %v549, %v548
      %v560 = vpack.c.bf16 %v551, %v550
      %v561 = vpack.c.bf16 %v553, %v552
      %v562 = vld [vmem:[%s3] sm:$0xf]
      %v563 = vld [vmem:[%s3 + $0x4] sm:$0xf]
      %v564 = vld [vmem:[%s3 + $0x8] sm:$0xf]
      %v565 = vld [vmem:[%s3 + $0xc] sm:$0xf]
      %v566 = vld [vmem:[%s4] sm:$0x1]
      %v568 = vlaneseq
      %v569 = vshrl.u32 %v568, 7
      %v570 = vsub.s32 0, %v569
      %v571 = vrot.slane %v566, %v570
      %v577 = vunpack.c.l.b16 %v562
      %v578 = vunpack.c.l.b16 %v563
      %v579 = vunpack.c.l.b16 %v564
      %v580 = vunpack.c.l.b16 %v565
      %v581 = vpack.c.b16 %v578, %v577
      %v582 = vpack.c.b16 %v580, %v579
      %v586 = vsel %vm416, %v554, 0
      %v589 = vsel %vm416, %v555, 0
      %v592 = vsel %vm416, %v556, 0
      %v595 = vsel %vm416, %v557, 0
      %v598 = vsel %vm416, %v558, 0
      %v601 = vsel %vm416, %v559, 0
      %v604 = vsel %vm416, %v560, 0
      %v607 = vsel %vm416, %v561, 0
      %609 = vmatprep.subr.bf16.mxu0 0
      %610 = vmatpush1.bf16.msra.mxu0 %v581
      %611 = vmatprep.subr.bf16.mxu0 0
      %612 = vmatpush1.bf16.msra.mxu0 %v582
      %613 = vmatprep.subr.bf16.mxu0 0
      %614 = vmatpush1.bf16.msra.mxu0 0
      %615 = vmatprep.subr.bf16.mxu0 0
      %616 = vmatpush1.bf16.msra.mxu0 0
      %617 = vmatprep.subr.bf16.mxu0 0
      %618 = vmatpush1.bf16.msra.mxu0 0
      %619 = vmatprep.subr.bf16.mxu0 0
      %620 = vmatpush1.bf16.msra.mxu0 0
      %621 = vmatprep.subr.bf16.mxu0 0
      %622 = vmatpush1.bf16.msra.mxu0 0
      %623 = vmatprep.subr.bf16.mxu0 0
      %624 = vmatpush1.bf16.msra.mxu0 0
      %625 = vmatprep.subr.bf16.mxu0 0
      %626 = vmatpush1.bf16.msra.mxu0 0
      %627 = vmatprep.subr.bf16.mxu0 0
      %628 = vmatpush1.bf16.msra.mxu0 0
      %629 = vmatprep.subr.bf16.mxu0 0
      %630 = vmatpush1.bf16.msra.mxu0 0
      %631 = vmatprep.subr.bf16.mxu0 0
      %632 = vmatpush1.bf16.msra.mxu0 0
      %633 = vmatprep.subr.bf16.mxu0 0
      %634 = vmatpush1.bf16.msra.mxu0 0
      %635 = vmatprep.subr.bf16.mxu0 0
      %636 = vmatpush1.bf16.msra.mxu0 0
      %637 = vmatprep.subr.bf16.mxu0 0
      %638 = vmatpush1.bf16.msra.mxu0 0
      %639 = vmatprep.subr.bf16.mxu0 0
      %640 = vmatpush1.bf16.msra.mxu0 0
      %641 = vmatprep.mubr.bf16.mxu0 0
      %642 = vmatmul.mubr.bf16.gmra.mrb[0].mxu0 %v586
      %v643 = vpop.f32.mrb[0].mxu0
      %v644 = vadd.f32 %v571, %v643
      %v645 = vpop.f32.mrb[0].mxu0
      %v646 = vpop.f32.mrb[0].mxu0
      %v647 = vadd.f32 %v571, %v646
      %v648 = vpop.f32.mrb[0].mxu0
      %649 = vmatprep.mubr.bf16.mxu0 0
      %650 = vmatmul.mubr.bf16.gmra.mrb[0].mxu0 %v589
      %v651 = vpop.f32.mrb[0].mxu0
      %v652 = vadd.f32 %v571, %v651
      %v653 = vpop.f32.mrb[0].mxu0
      %v654 = vpop.f32.mrb[0].mxu0
      %v655 = vadd.f32 %v571, %v654
      %v656 = vpop.f32.mrb[0].mxu0
      %657 = vmatprep.mubr.bf16.mxu0 0
      %658 = vmatmul.mubr.bf16.gmra.mrb[0].mxu0 %v592
      %v659 = vpop.f32.mrb[0].mxu0
      %v660 = vadd.f32 %v571, %v659
      %v661 = vpop.f32.mrb[0].mxu0
      %v662 = vpop.f32.mrb[0].mxu0
      %v663 = vadd.f32 %v571, %v662
      %v664 = vpop.f32.mrb[0].mxu0
      %665 = vmatprep.mubr.bf16.mxu0 0
      %666 = vmatmul.mubr.bf16.gmra.mrb[0].mxu0 %v595
      %v667 = vpop.f32.mrb[0].mxu0
      %v668 = vadd.f32 %v571, %v667
      %v669 = vpop.f32.mrb[0].mxu0
      %v670 = vpop.f32.mrb[0].mxu0
      %v671 = vadd.f32 %v571, %v670
      %v672 = vpop.f32.mrb[0].mxu0
      %673 = vmatprep.mubr.bf16.mxu0 0
      %674 = vmatmul.mubr.bf16.gmra.mrb[0].mxu0 %v598
      %v675 = vpop.f32.mrb[0].mxu0
      %v676 = vadd.f32 %v571, %v675
      %v677 = vpop.f32.mrb[0].mxu0
      %v678 = vpop.f32.mrb[0].mxu0
      %v679 = vadd.f32 %v571, %v678
      %v680 = vpop.f32.mrb[0].mxu0
      %681 = vmatprep.mubr.bf16.mxu0 0
      %682 = vmatmul.mubr.bf16.gmra.mrb[0].mxu0 %v601
      %v683 = vpop.f32.mrb[0].mxu0
      %v684 = vadd.f32 %v571, %v683
      %v685 = vpop.f32.mrb[0].mxu0
      %v686 = vpop.f32.mrb[0].mxu0
      %v687 = vadd.f32 %v571, %v686
      %v688 = vpop.f32.mrb[0].mxu0
      %689 = vmatprep.mubr.bf16.mxu0 0
      %690 = vmatmul.mubr.bf16.gmra.mrb[0].mxu0 %v604
      %v691 = vpop.f32.mrb[0].mxu0
      %v692 = vadd.f32 %v571, %v691
      %v693 = vpop.f32.mrb[0].mxu0
      %v694 = vpop.f32.mrb[0].mxu0
      %v695 = vadd.f32 %v571, %v694
      %v696 = vpop.f32.mrb[0].mxu0
      %697 = vmatprep.mubr.bf16.mxu0 0
      %698 = vmatmul.mubr.bf16.gmra.mrb[0].mxu0 %v607
      %v699 = vpop.f32.mrb[0].mxu0
      %v700 = vadd.f32 %v571, %v699
      %v701 = vpop.f32.mrb[0].mxu0
      %v702 = vpop.f32.mrb[0].mxu0
      %v703 = vadd.f32 %v571, %v702
      %v704 = vpop.f32.mrb[0].mxu0
      %705 = vdwg.mxu0
      %v706 = vmax.f32 %v644, 0.0
      %v707 = vmax.f32 %v647, 0.0
      %v708 = vmax.f32 %v652, 0.0
      %v709 = vmax.f32 %v655, 0.0
      %v710 = vmax.f32 %v660, 0.0
      %v711 = vmax.f32 %v663, 0.0
      %v712 = vmax.f32 %v668, 0.0
      %v713 = vmax.f32 %v671, 0.0
      %v714 = vmax.f32 %v676, 0.0
      %v715 = vmax.f32 %v679, 0.0
      %v716 = vmax.f32 %v684, 0.0
      %v717 = vmax.f32 %v687, 0.0
      %v718 = vmax.f32 %v692, 0.0
      %v719 = vmax.f32 %v695, 0.0
      %v720 = vmax.f32 %v700, 0.0
      %v721 = vmax.f32 %v703, 0.0
      %v722 = vpack.c.bf16 %v707, %v706
      %v723 = vpack.c.bf16 %v709, %v708
      %v724 = vpack.c.bf16 %v711, %v710
      %v725 = vpack.c.bf16 %v713, %v712
      %v726 = vpack.c.bf16 %v715, %v714
      %v727 = vpack.c.bf16 %v717, %v716
      %v728 = vpack.c.bf16 %v719, %v718
      %v729 = vpack.c.bf16 %v721, %v720
      %v730 = vld [vmem:[%s5] sm:$0xf]
      %v731 = vld [vmem:[%s5 + $0x4] sm:$0xf]
      %v732 = vld [vmem:[%s5 + $0x8] sm:$0xf]
      %v733 = vld [vmem:[%s5 + $0xc] sm:$0xf]
      %v734 = vld [vmem:[%s6] sm:$0x1]
      %v736 = vlaneseq
      %v737 = vshrl.u32 %v736, 7
      %v738 = vsub.s32 0, %v737
      %v739 = vrot.slane %v734, %v738
      %v745 = vunpack.c.l.b16 %v730
      %v746 = vunpack.c.l.b16 %v731
      %v747 = vunpack.c.l.b16 %v732
      %v748 = vunpack.c.l.b16 %v733
      %v749 = vpack.c.b16 %v746, %v745
      %v750 = vpack.c.b16 %v748, %v747
      %v754 = vsel %vm416, %v722, 0
      %v757 = vsel %vm416, %v723, 0
      %v760 = vsel %vm416, %v724, 0
      %v763 = vsel %vm416, %v725, 0
      %v766 = vsel %vm416, %v726, 0
      %v769 = vsel %vm416, %v727, 0
      %v772 = vsel %vm416, %v728, 0
      %v775 = vsel %vm416, %v729, 0
      %777 = vmatprep.subr.bf16.mxu0 0
      %778 = vmatpush1.bf16.msra.mxu0 %v749
      %779 = vmatprep.subr.bf16.mxu0 0
      %780 = vmatpush1.bf16.msra.mxu0 %v750
      %781 = vmatprep.subr.bf16.mxu0 0
      %782 = vmatpush1.bf16.msra.mxu0 0
      %783 = vmatprep.subr.bf16.mxu0 0
      %784 = vmatpush1.bf16.msra.mxu0 0
      %785 = vmatprep.subr.bf16.mxu0 0
      %786 = vmatpush1.bf16.msra.mxu0 0
      %787 = vmatprep.subr.bf16.mxu0 0
      %788 = vmatpush1.bf16.msra.mxu0 0
      %789 = vmatprep.subr.bf16.mxu0 0
      %790 = vmatpush1.bf16.msra.mxu0 0
      %791 = vmatprep.subr.bf16.mxu0 0
      %792 = vmatpush1.bf16.msra.mxu0 0
      %793 = vmatprep.subr.bf16.mxu0 0
      %794 = vmatpush1.bf16.msra.mxu0 0
      %795 = vmatprep.subr.bf16.mxu0 0
      %796 = vmatpush1.bf16.msra.mxu0 0
      %797 = vmatprep.subr.bf16.mxu0 0
      %798 = vmatpush1.bf16.msra.mxu0 0
      %799 = vmatprep.subr.bf16.mxu0 0
      %800 = vmatpush1.bf16.msra.mxu0 0
      %801 = vmatprep.subr.bf16.mxu0 0
      %802 = vmatpush1.bf16.msra.mxu0 0
      %803 = vmatprep.subr.bf16.mxu0 0
      %804 = vmatpush1.bf16.msra.mxu0 0
      %805 = vmatprep.subr.bf16.mxu0 0
      %806 = vmatpush1.bf16.msra.mxu0 0
      %807 = vmatprep.subr.bf16.mxu0 0
      %808 = vmatpush1.bf16.msra.mxu0 0
      %809 = vmatprep.mubr.bf16.mxu0 0
      %810 = vmatmul.mubr.bf16.gmra.mrb[0].mxu0 %v754
      %v811 = vpop.f32.mrb[0].mxu0
      %v812 = vadd.f32 %v739, %v811
      %v813 = vpop.f32.mrb[0].mxu0
      %v814 = vpop.f32.mrb[0].mxu0
      %v815 = vadd.f32 %v739, %v814
      %v816 = vpop.f32.mrb[0].mxu0
      %817 = vmatprep.mubr.bf16.mxu0 0
      %818 = vmatmul.mubr.bf16.gmra.mrb[0].mxu0 %v757
      %v819 = vpop.f32.mrb[0].mxu0
      %v820 = vadd.f32 %v739, %v819
      %v821 = vpop.f32.mrb[0].mxu0
      %v822 = vpop.f32.mrb[0].mxu0
      %v823 = vadd.f32 %v739, %v822
      %v824 = vpop.f32.mrb[0].mxu0
      %825 = vmatprep.mubr.bf16.mxu0 0
      %826 = vmatmul.mubr.bf16.gmra.mrb[0].mxu0 %v760
      %v827 = vpop.f32.mrb[0].mxu0
      %v828 = vadd.f32 %v739, %v827
      %v829 = vpop.f32.mrb[0].mxu0
      %v830 = vpop.f32.mrb[0].mxu0
      %v831 = vadd.f32 %v739, %v830
      %v832 = vpop.f32.mrb[0].mxu0
      %833 = vmatprep.mubr.bf16.mxu0 0
      %834 = vmatmul.mubr.bf16.gmra.mrb[0].mxu0 %v763
      %v835 = vpop.f32.mrb[0].mxu0
      %v836 = vadd.f32 %v739, %v835
      %v837 = vpop.f32.mrb[0].mxu0
      %v838 = vpop.f32.mrb[0].mxu0
      %v839 = vadd.f32 %v739, %v838
      %v840 = vpop.f32.mrb[0].mxu0
      %841 = vmatprep.mubr.bf16.mxu0 0
      %842 = vmatmul.mubr.bf16.gmra.mrb[0].mxu0 %v766
      %v843 = vpop.f32.mrb[0].mxu0
      %v844 = vadd.f32 %v739, %v843
      %v845 = vpop.f32.mrb[0].mxu0
      %v846 = vpop.f32.mrb[0].mxu0
      %v847 = vadd.f32 %v739, %v846
      %v848 = vpop.f32.mrb[0].mxu0
      %849 = vmatprep.mubr.bf16.mxu0 0
      %850 = vmatmul.mubr.bf16.gmra.mrb[0].mxu0 %v769
      %v851 = vpop.f32.mrb[0].mxu0
      %v852 = vadd.f32 %v739, %v851
      %v853 = vpop.f32.mrb[0].mxu0
      %v854 = vpop.f32.mrb[0].mxu0
      %v855 = vadd.f32 %v739, %v854
      %v856 = vpop.f32.mrb[0].mxu0
      %857 = vmatprep.mubr.bf16.mxu0 0
      %858 = vmatmul.mubr.bf16.gmra.mrb[0].mxu0 %v772
      %v859 = vpop.f32.mrb[0].mxu0
      %v860 = vadd.f32 %v739, %v859
      %v861 = vpop.f32.mrb[0].mxu0
      %v862 = vpop.f32.mrb[0].mxu0
      %v863 = vadd.f32 %v739, %v862
      %v864 = vpop.f32.mrb[0].mxu0
      %865 = vmatprep.mubr.bf16.mxu0 0
      %866 = vmatmul.mubr.bf16.gmra.mrb[0].mxu0 %v775
      %v867 = vpop.f32.mrb[0].mxu0
      %v868 = vadd.f32 %v739, %v867
      %v869 = vpop.f32.mrb[0].mxu0
      %v870 = vpop.f32.mrb[0].mxu0
      %v871 = vadd.f32 %v739, %v870
      %v872 = vpop.f32.mrb[0].mxu0
      %873 = vdwg.mxu0
      %v874 = vmax.f32 %v812, 0.0
      %v875 = vmax.f32 %v815, 0.0
      %v876 = vmax.f32 %v820, 0.0
      %v877 = vmax.f32 %v823, 0.0
      %v878 = vmax.f32 %v828, 0.0
      %v879 = vmax.f32 %v831, 0.0
      %v880 = vmax.f32 %v836, 0.0
      %v881 = vmax.f32 %v839, 0.0
      %v882 = vmax.f32 %v844, 0.0
      %v883 = vmax.f32 %v847, 0.0
      %v884 = vmax.f32 %v852, 0.0
      %v885 = vmax.f32 %v855, 0.0
      %v886 = vmax.f32 %v860, 0.0
      %v887 = vmax.f32 %v863, 0.0
      %v888 = vmax.f32 %v868, 0.0
      %v889 = vmax.f32 %v871, 0.0
      %v890 = vpack.c.bf16 %v875, %v874
      %v891 = vpack.c.bf16 %v877, %v876
      %v892 = vpack.c.bf16 %v879, %v878
      %v893 = vpack.c.bf16 %v881, %v880
      %v894 = vpack.c.bf16 %v883, %v882
      %v895 = vpack.c.bf16 %v885, %v884
      %v896 = vpack.c.bf16 %v887, %v886
      %v897 = vpack.c.bf16 %v889, %v888
      %v898 = vld [vmem:[%s7] sm:$0xf]
      %v899 = vld [vmem:[%s7 + $0x4] sm:$0xf]
      %v900 = vld [vmem:[%s7 + $0x8] sm:$0xf]
      %v901 = vld [vmem:[%s7 + $0xc] sm:$0xf]
      %v902 = vld [vmem:[%s8] sm:$0x1]
      %v904 = vlaneseq
      %v905 = vshrl.u32 %v904, 7
      %v906 = vsub.s32 0, %v905
      %v907 = vrot.slane %v902, %v906
      %v913 = vunpack.c.l.b16 %v898
      %v914 = vunpack.c.l.b16 %v899
      %v915 = vunpack.c.l.b16 %v900
      %v916 = vunpack.c.l.b16 %v901
      %v917 = vpack.c.b16 %v914, %v913
      %v918 = vpack.c.b16 %v916, %v915
      %v922 = vsel %vm416, %v890, 0
      %v925 = vsel %vm416, %v891, 0
      %v928 = vsel %vm416, %v892, 0
      %v931 = vsel %vm416, %v893, 0
      %v934 = vsel %vm416, %v894, 0
      %v937 = vsel %vm416, %v895, 0
      %v940 = vsel %vm416, %v896, 0
      %v943 = vsel %vm416, %v897, 0
      %945 = vmatprep.subr.bf16.mxu0 0
      %946 = vmatpush1.bf16.msra.mxu0 %v917
      %947 = vmatprep.subr.bf16.mxu0 0
      %948 = vmatpush1.bf16.msra.mxu0 %v918
      %949 = vmatprep.subr.bf16.mxu0 0
      %950 = vmatpush1.bf16.msra.mxu0 0
      %951 = vmatprep.subr.bf16.mxu0 0
      %952 = vmatpush1.bf16.msra.mxu0 0
      %953 = vmatprep.subr.bf16.mxu0 0
      %954 = vmatpush1.bf16.msra.mxu0 0
      %955 = vmatprep.subr.bf16.mxu0 0
      %956 = vmatpush1.bf16.msra.mxu0 0
      %957 = vmatprep.subr.bf16.mxu0 0
      %958 = vmatpush1.bf16.msra.mxu0 0
      %959 = vmatprep.subr.bf16.mxu0 0
      %960 = vmatpush1.bf16.msra.mxu0 0
      %961 = vmatprep.subr.bf16.mxu0 0
      %962 = vmatpush1.bf16.msra.mxu0 0
      %963 = vmatprep.subr.bf16.mxu0 0
      %964 = vmatpush1.bf16.msra.mxu0 0
      %965 = vmatprep.subr.bf16.mxu0 0
      %966 = vmatpush1.bf16.msra.mxu0 0
      %967 = vmatprep.subr.bf16.mxu0 0
      %968 = vmatpush1.bf16.msra.mxu0 0
      %969 = vmatprep.subr.bf16.mxu0 0
      %970 = vmatpush1.bf16.msra.mxu0 0
      %971 = vmatprep.subr.bf16.mxu0 0
      %972 = vmatpush1.bf16.msra.mxu0 0
      %973 = vmatprep.subr.bf16.mxu0 0
      %974 = vmatpush1.bf16.msra.mxu0 0
      %975 = vmatprep.subr.bf16.mxu0 0
      %976 = vmatpush1.bf16.msra.mxu0 0
      %977 = vmatprep.mubr.bf16.mxu0 0
      %978 = vmatmul.mubr.bf16.gmra.mrb[0].mxu0 %v922
      %v979 = vpop.f32.mrb[0].mxu0
      %v980 = vadd.f32 %v907, %v979
      %v981 = vpop.f32.mrb[0].mxu0
      %v982 = vpop.f32.mrb[0].mxu0
      %v983 = vadd.f32 %v907, %v982
      %v984 = vpop.f32.mrb[0].mxu0
      %985 = vmatprep.mubr.bf16.mxu0 0
      %986 = vmatmul.mubr.bf16.gmra.mrb[0].mxu0 %v925
      %v987 = vpop.f32.mrb[0].mxu0
      %v988 = vadd.f32 %v907, %v987
      %v989 = vpop.f32.mrb[0].mxu0
      %v990 = vpop.f32.mrb[0].mxu0
      %v991 = vadd.f32 %v907, %v990
      %v992 = vpop.f32.mrb[0].mxu0
      %993 = vmatprep.mubr.bf16.mxu0 0
      %994 = vmatmul.mubr.bf16.gmra.mrb[0].mxu0 %v928
      %v995 = vpop.f32.mrb[0].mxu0
      %v996 = vadd.f32 %v907, %v995
      %v997 = vpop.f32.mrb[0].mxu0
      %v998 = vpop.f32.mrb[0].mxu0
      %v999 = vadd.f32 %v907, %v998
      %v1000 = vpop.f32.mrb[0].mxu0
      %1001 = vmatprep.mubr.bf16.mxu0 0
      %1002 = vmatmul.mubr.bf16.gmra.mrb[0].mxu0 %v931
      %v1003 = vpop.f32.mrb[0].mxu0
      %v1004 = vadd.f32 %v907, %v1003
      %v1005 = vpop.f32.mrb[0].mxu0
      %v1006 = vpop.f32.mrb[0].mxu0
      %v1007 = vadd.f32 %v907, %v1006
      %v1008 = vpop.f32.mrb[0].mxu0
      %1009 = vmatprep.mubr.bf16.mxu0 0
      %1010 = vmatmul.mubr.bf16.gmra.mrb[0].mxu0 %v934
      %v1011 = vpop.f32.mrb[0].mxu0
      %v1012 = vadd.f32 %v907, %v1011
      %v1013 = vpop.f32.mrb[0].mxu0
      %v1014 = vpop.f32.mrb[0].mxu0
      %v1015 = vadd.f32 %v907, %v1014
      %v1016 = vpop.f32.mrb[0].mxu0
      %1017 = vmatprep.mubr.bf16.mxu0 0
      %1018 = vmatmul.mubr.bf16.gmra.mrb[0].mxu0 %v937
      %v1019 = vpop.f32.mrb[0].mxu0
      %v1020 = vadd.f32 %v907, %v1019
      %v1021 = vpop.f32.mrb[0].mxu0
      %v1022 = vpop.f32.mrb[0].mxu0
      %v1023 = vadd.f32 %v907, %v1022
      %v1024 = vpop.f32.mrb[0].mxu0
      %1025 = vmatprep.mubr.bf16.mxu0 0
      %1026 = vmatmul.mubr.bf16.gmra.mrb[0].mxu0 %v940
      %v1027 = vpop.f32.mrb[0].mxu0
      %v1028 = vadd.f32 %v907, %v1027
      %v1029 = vpop.f32.mrb[0].mxu0
      %v1030 = vpop.f32.mrb[0].mxu0
      %v1031 = vadd.f32 %v907, %v1030
      %v1032 = vpop.f32.mrb[0].mxu0
      %1033 = vmatprep.mubr.bf16.mxu0 0
      %1034 = vmatmul.mubr.bf16.gmra.mrb[0].mxu0 %v943
      %v1035 = vpop.f32.mrb[0].mxu0
      %v1036 = vadd.f32 %v907, %v1035
      %v1037 = vpop.f32.mrb[0].mxu0
      %v1038 = vpop.f32.mrb[0].mxu0
      %v1039 = vadd.f32 %v907, %v1038
      %v1040 = vpop.f32.mrb[0].mxu0
      %1041 = vdwg.mxu0
      %v1042 = vsub.f32 0.0, %v980
      %v1043 = vsub.f32 0.0, %v983
      %v1044 = vsub.f32 0.0, %v988
      %v1045 = vsub.f32 0.0, %v991
      %v1046 = vsub.f32 0.0, %v996
      %v1047 = vsub.f32 0.0, %v999
      %v1048 = vsub.f32 0.0, %v1004
      %v1049 = vsub.f32 0.0, %v1007
      %v1050 = vsub.f32 0.0, %v1012
      %v1051 = vsub.f32 0.0, %v1015
      %v1052 = vsub.f32 0.0, %v1020
      %v1053 = vsub.f32 0.0, %v1023
      %v1054 = vsub.f32 0.0, %v1028
      %v1055 = vsub.f32 0.0, %v1031
      %v1056 = vsub.f32 0.0, %v1036
      %v1057 = vsub.f32 0.0, %v1039
      %v1058 = vmul.f32 %v1042, 1.442695
      %v1059 = vpow.pop %v1058
      %v1060 = vmul.f32 %v1043, 1.442695
      %v1061 = vpow.pop %v1060
      %v1062 = vmul.f32 %v1044, 1.442695
      %v1063 = vpow.pop %v1062
      %v1064 = vmul.f32 %v1045, 1.442695
      %v1065 = vpow.pop %v1064
      %v1066 = vmul.f32 %v1046, 1.442695
      %v1067 = vpow.pop %v1066
      %v1068 = vmul.f32 %v1047, 1.442695
      %v1069 = vpow.pop %v1068
      %v1070 = vmul.f32 %v1048, 1.442695
      %v1071 = vpow.pop %v1070
      %v1072 = vmul.f32 %v1049, 1.442695
      %v1073 = vpow.pop %v1072
      %v1074 = vmul.f32 %v1050, 1.442695
      %v1075 = vpow.pop %v1074
      %v1076 = vmul.f32 %v1051, 1.442695
      %v1077 = vpow.pop %v1076
      %v1078 = vmul.f32 %v1052, 1.442695
      %v1079 = vpow.pop %v1078
      %v1080 = vmul.f32 %v1053, 1.442695
      %v1081 = vpow.pop %v1080
      %v1082 = vmul.f32 %v1054, 1.442695
      %v1083 = vpow.pop %v1082
      %v1084 = vmul.f32 %v1055, 1.442695
      %v1085 = vpow.pop %v1084
      %v1086 = vmul.f32 %v1056, 1.442695
      %v1087 = vpow.pop %v1086
      %v1088 = vmul.f32 %v1057, 1.442695
      %v1089 = vpow.pop %v1088
      %v1090 = vadd.f32 %v1059, 1.0
      %v1091 = vadd.f32 %v1061, 1.0
      %v1092 = vadd.f32 %v1063, 1.0
      %v1093 = vadd.f32 %v1065, 1.0
      %v1094 = vadd.f32 %v1067, 1.0
      %v1095 = vadd.f32 %v1069, 1.0
      %v1096 = vadd.f32 %v1071, 1.0
      %v1097 = vadd.f32 %v1073, 1.0
      %v1098 = vadd.f32 %v1075, 1.0
      %v1099 = vadd.f32 %v1077, 1.0
      %v1100 = vadd.f32 %v1079, 1.0
      %v1101 = vadd.f32 %v1081, 1.0
      %v1102 = vadd.f32 %v1083, 1.0
      %v1103 = vadd.f32 %v1085, 1.0
      %v1104 = vadd.f32 %v1087, 1.0
      %v1105 = vadd.f32 %v1089, 1.0
      %v1106 = vrcp.pop %v1090
      %v1107 = vrcp.pop %v1091
      %v1108 = vrcp.pop %v1092
      %v1109 = vrcp.pop %v1093
      %v1110 = vrcp.pop %v1094
      %v1111 = vrcp.pop %v1095
      %v1112 = vrcp.pop %v1096
      %v1113 = vrcp.pop %v1097
      %v1114 = vrcp.pop %v1098
      %v1115 = vrcp.pop %v1099
      %v1116 = vrcp.pop %v1100
      %v1117 = vrcp.pop %v1101
      %v1118 = vrcp.pop %v1102
      %v1119 = vrcp.pop %v1103
      %v1120 = vrcp.pop %v1104
      %v1121 = vrcp.pop %v1105
      %vm1122 = vcmask 15360
      %1123 = vst.msk [vmem:[%s334] sm:$0xff] %vm1122, %v1106
      %1124 = vst.msk [vmem:[%s334 + $0x8] sm:$0xff] %vm1122, %v1107
      %1125 = vst.msk [vmem:[%s334 + $0x10] sm:$0xff] %vm1122, %v1108
      %1126 = vst.msk [vmem:[%s334 + $0x18] sm:$0xff] %vm1122, %v1109
      %1127 = vst.msk [vmem:[%s334 + $0x20] sm:$0xff] %vm1122, %v1110
      %1128 = vst.msk [vmem:[%s334 + $0x28] sm:$0xff] %vm1122, %v1111
      %1129 = vst.msk [vmem:[%s334 + $0x30] sm:$0xff] %vm1122, %v1112
      %1130 = vst.msk [vmem:[%s334 + $0x38] sm:$0xff] %vm1122, %v1113
      %1131 = vst.msk [vmem:[%s334 + $0x40] sm:$0xff] %vm1122, %v1114
      %1132 = vst.msk [vmem:[%s334 + $0x48] sm:$0xff] %vm1122, %v1115
      %1133 = vst.msk [vmem:[%s334 + $0x50] sm:$0xff] %vm1122, %v1116
      %1134 = vst.msk [vmem:[%s334 + $0x58] sm:$0xff] %vm1122, %v1117
      %1135 = vst.msk [vmem:[%s334 + $0x60] sm:$0xff] %vm1122, %v1118
      %1136 = vst.msk [vmem:[%s334 + $0x68] sm:$0xff] %vm1122, %v1119
      %1137 = vst.msk [vmem:[%s334 + $0x70] sm:$0xff] %vm1122, %v1120
      %1138 = vst.msk [vmem:[%s334 + $0x78] sm:$0xff] %vm1122, %v1121
      %s1139 = smul.u32 16, %s20
      %p1140 = scmp.lt.s32.totalorder %s1139, 31
      %s1141 = scalar_select %p1140, %s1139, 31
      %s1142 = smul.addr %s1141, 8
      %s1143 = scalar_lea.vmem %s9, %s1142
      // Predicated region
      $region57: #{classifier_forward.1} parent=55 // pred_check
        %p1144 = pneg %p232
      $region58: #{classifier_forward.1} parent=55 // pred_check_branch
        %1146 = sbr.rel (%p1144) target = $region60
      $region59: #{classifier_forward.1} parent=55 // pred_region
        %s1147 = smul.u32 16, %s20
      $region60: #{classifier_forward.1} parent=55 // pred_fallthru
        _
    $region56: #{classifier_forward.1} parent=5 // pred_fallthru
      _
    %p1148 = scmp.le.s32.totalorder 2, %s15
    // Predicated region
    $region61: #{classifier_forward.1} parent=5 // pred_check
      %p1149 = pneg %p1148
    $region62: #{classifier_forward.1} parent=5 // pred_check_branch
      %1151 = sbr.rel (%p1149) target = $region64
    $region63: #{classifier_forward.1} parent=5 // pred_region
      %s1152 = ssub.s32 %s15, 2
      // Predicated region
      $region65: #{classifier_forward.1} parent=63 // pred_check
        %p1153 = pneg %p238
      $region66: #{classifier_forward.1} parent=63 // pred_check_branch
        %1155 = sbr.rel (%p1153) target = $region68
      $region67: #{classifier_forward.1} parent=63 // pred_region
        %s1156 = smul.u32 16, %s21
        %p1157 = scmp.lt.s32.totalorder %s1156, 31
        %s1158 = scalar_select %p1157, %s1156, 31
        %s1159 = smul.addr %s1158, 8
        %s1160 = scalar_lea.vmem %s9, %s1159
      $region68: #{classifier_forward.1} parent=63 // pred_fallthru
        _
    $region64: #{classifier_forward.1} parent=5 // pred_fallthru
      _
  $region6: #{classifier_forward.1} parent=0 // loop_footer
    %s19 = sadd.s32 1, %s15
  $region7: #{classifier_forward.1} parent=0 // loop_footer_branch
    %14 = sbr.rel target = $region3
  $region8: #{classifier_forward.1} parent=0 // loop_exit
    _

</llo_original>
